<compile_context>
chip_gen: v6e
topology: v6e:2x2x1
jax: 0.10.0
libtpu: 0.0.40
codegen_flags: <defaults>
</compile_context>

<pallas_src>
import jax
import jax.numpy as jnp
from jax.experimental import pallas as pl
from jax.experimental.pallas import tpu as pltpu

IN_FEATURES = 3
OUT_FEATURES = 5
LANE_TILE = 512  # batch rows per grid step (maps to the 128-lane axis)


def linear_tanh_kernel(xt_ref, w_ref, b_ref, o_ref):
    # xt_ref: (3, LB)   transposed activations, batch on the lane axis
    # w_ref : (5, 3)    PyTorch-layout weight (out_features, in_features)
    # b_ref : (5, 1)    bias as a per-sublane constant
    # o_ref : (5, LB)   lane-dense output (full unmasked stores)
    w = w_ref[...]
    b = b_ref[...]
    # Unrolled K=3 contraction on the VPU — no MXU push/drain for a 3x5 matmul.
    y = w[:, 0:1] * xt_ref[0:1, :]
    y = y + w[:, 1:2] * xt_ref[1:2, :]
    y = y + w[:, 2:3] * xt_ref[2:3, :]
    y = y + b
    o_ref[...] = jnp.tanh(y).astype(o_ref.dtype)


def linear_tanh(x, w, b, *, lane_tile=LANE_TILE):
    """tanh(x @ w.T + b);  x: (B, 3), w: (5, 3) [PyTorch layout], b: (5,)."""
    B = x.shape[0]
    x = x.astype(jnp.float32)  # keep VPU/EUP math in f32 (v5e has no bf16 VPU)
    b_pad = ((B + lane_tile - 1) // lane_tile) * lane_tile

    # Transpose so batch maps to the lane axis; zero-pad to the tile size.
    xt = jnp.zeros((IN_FEATURES, b_pad), jnp.float32).at[:, :B].set(x.T)
    w2 = w.astype(jnp.float32)                                    # (5, 3)
    b2 = b.astype(jnp.float32).reshape(OUT_FEATURES, 1)           # (5, 1)

    out_t = pl.pallas_call(
        linear_tanh_kernel,
        out_shape=jax.ShapeDtypeStruct((OUT_FEATURES, b_pad), jnp.float32),
        grid_spec=pltpu.PrefetchScalarGridSpec(
            num_scalar_prefetch=0,
            grid=(b_pad // lane_tile,),
            in_specs=[
                pl.BlockSpec((IN_FEATURES, lane_tile), lambda i: (0, i)),
                pl.BlockSpec((OUT_FEATURES, IN_FEATURES), lambda i: (0, 0)),
                pl.BlockSpec((OUT_FEATURES, 1), lambda i: (0, 0)),
            ],
            out_specs=pl.BlockSpec((OUT_FEATURES, lane_tile), lambda i: (0, i)),
        ),
        compiler_params=pltpu.CompilerParams(
            dimension_semantics=("parallel",),
        ),
    )(xt, w2, b2)

    return out_t[:, :B].T  # back to (B, 5)


if __name__ == "__main__":
    key = jax.random.PRNGKey(0)
    k_x, k_w, k_b = jax.random.split(key, 3)

    batch = 8

    # Deterministic init mimicking nn.Linear uniform(-1/sqrt(fan_in), +...)
    bound = 1.0 / jnp.sqrt(jnp.float32(IN_FEATURES))
    w = jax.random.uniform(k_w, (OUT_FEATURES, IN_FEATURES), jnp.float32,
                           minval=-bound, maxval=bound)   # PyTorch (out, in)
    b = jax.random.uniform(k_b, (OUT_FEATURES,), jnp.float32,
                           minval=-bound, maxval=bound)
    x = jax.random.normal(k_x, (batch, IN_FEATURES), jnp.float32)

    out = jax.block_until_ready(linear_tanh(x, w, b))

    # Sanity check against plain-JAX reference (PyTorch semantics: x @ W.T + b)
    ref = jnp.tanh(x @ w.T + b)
    assert out.shape == (batch, OUT_FEATURES)
    assert jnp.allclose(out, ref, atol=1e-5, rtol=1e-5)

    print("KERNEL_OK")
</pallas_src>

<mosaic_0001>
module attributes {stable_mosaic.version = 11 : i64} {
  func.func @linear_tanh_kernel(%arg0: i32, %arg1: memref<3x512xf32, #tpu.memory_space<vmem>>, %arg2: memref<5x3xf32, #tpu.memory_space<vmem>>, %arg3: memref<5x1xf32, #tpu.memory_space<vmem>>, %arg4: memref<5x512xf32, #tpu.memory_space<vmem>>) attributes {dimension_semantics = [#tpu.dimension_semantics<parallel>], iteration_bounds = array<i64: 1>, scalar_prefetch = 0 : i64, scratch_operands = 0 : i64, tpu.core_type = #tpu.core_type<tc>, window_params = [{transform_indices = @transform_0, window_bounds = array<i64: 3, 512>}, {pipeline_mode = #tpu.pipeline_mode<synchronous>, transform_indices = @transform_1, window_bounds = array<i64: 5, 3>}, {pipeline_mode = #tpu.pipeline_mode<synchronous>, transform_indices = @transform_2, window_bounds = array<i64: 5, 1>}, {transform_indices = @transform_3, window_bounds = array<i64: 5, 512>}]} {
    %c0 = arith.constant 0 : index
    %c0_0 = arith.constant 0 : index
    %0 = vector.load %arg2[%c0, %c0_0] : memref<5x3xf32, #tpu.memory_space<vmem>>, vector<5x3xf32>
    %c0_1 = arith.constant 0 : index
    %c0_2 = arith.constant 0 : index
    %1 = vector.load %arg3[%c0_1, %c0_2] : memref<5x1xf32, #tpu.memory_space<vmem>>, vector<5x1xf32>
    %2 = vector.extract_strided_slice %0 {offsets = [0, 0], sizes = [5, 1], strides = [1, 1]} : vector<5x3xf32> to vector<5x1xf32>
    %c0_3 = arith.constant 0 : index
    %c0_4 = arith.constant 0 : index
    %3 = vector.load %arg1[%c0_3, %c0_4] : memref<3x512xf32, #tpu.memory_space<vmem>>, vector<1x512xf32>
    %4 = vector.broadcast %2 : vector<5x1xf32> to vector<5x512xf32>
    %5 = vector.broadcast %3 : vector<1x512xf32> to vector<5x512xf32>
    %6 = arith.mulf %4, %5 : vector<5x512xf32>
    %7 = vector.extract_strided_slice %0 {offsets = [0, 1], sizes = [5, 1], strides = [1, 1]} : vector<5x3xf32> to vector<5x1xf32>
    %c1 = arith.constant 1 : index
    %c0_5 = arith.constant 0 : index
    %8 = vector.load %arg1[%c1, %c0_5] : memref<3x512xf32, #tpu.memory_space<vmem>>, vector<1x512xf32>
    %9 = vector.broadcast %7 : vector<5x1xf32> to vector<5x512xf32>
    %10 = vector.broadcast %8 : vector<1x512xf32> to vector<5x512xf32>
    %11 = arith.mulf %9, %10 : vector<5x512xf32>
    %12 = arith.addf %6, %11 : vector<5x512xf32>
    %13 = vector.extract_strided_slice %0 {offsets = [0, 2], sizes = [5, 1], strides = [1, 1]} : vector<5x3xf32> to vector<5x1xf32>
    %c2 = arith.constant 2 : index
    %c0_6 = arith.constant 0 : index
    %14 = vector.load %arg1[%c2, %c0_6] : memref<3x512xf32, #tpu.memory_space<vmem>>, vector<1x512xf32>
    %15 = vector.broadcast %13 : vector<5x1xf32> to vector<5x512xf32>
    %16 = vector.broadcast %14 : vector<1x512xf32> to vector<5x512xf32>
    %17 = arith.mulf %15, %16 : vector<5x512xf32>
    %18 = arith.addf %12, %17 : vector<5x512xf32>
    %19 = vector.broadcast %1 : vector<5x1xf32> to vector<5x512xf32>
    %20 = arith.addf %18, %19 : vector<5x512xf32>
    %21 = math.tanh %20 : vector<5x512xf32>
    %c0_7 = arith.constant 0 : index
    %c0_8 = arith.constant 0 : index
    %22 = vector.load %arg4[%c0_7, %c0_8] : memref<5x512xf32, #tpu.memory_space<vmem>>, vector<5x512xf32>
    tpu.vector_store %arg4[%c0_7, %c0_8], %21 {strides = array<i32>} : memref<5x512xf32, #tpu.memory_space<vmem>>, vector<5x512xf32>,
    return
  }
  func.func @transform_0(%arg0: i32) -> (i32, i32) {
    %c0_i32 = arith.constant 0 : i32
    %c0_i32_0 = arith.constant 0 : i32
    return %c0_i32, %arg0 : i32, i32
  }
  func.func @transform_1(%arg0: i32) -> (i32, i32) {
    %c0_i32 = arith.constant 0 : i32
    %c0_i32_0 = arith.constant 0 : i32
    %c0_i32_1 = arith.constant 0 : i32
    return %c0_i32, %c0_i32_0 : i32, i32
  }
  func.func @transform_2(%arg0: i32) -> (i32, i32) {
    %c0_i32 = arith.constant 0 : i32
    %c0_i32_0 = arith.constant 0 : i32
    %c0_i32_1 = arith.constant 0 : i32
    return %c0_i32, %c0_i32_0 : i32, i32
  }
  func.func @transform_3(%arg0: i32) -> (i32, i32) {
    %c0_i32 = arith.constant 0 : i32
    %c0_i32_0 = arith.constant 0 : i32
    return %c0_i32, %arg0 : i32, i32
  }
}

</mosaic_0001>

<llo_original>
// kernel: tpu_custom_call.1
$region0: #{tpu_custom_call.1}
  #allocation0 [shape = 'u32[]', space=smem, size = 0x4, offset = 0x4, fixed_abs, tag = 'smem constant byte address 0x4 - core index']
  #allocation1 [shape = 'u32[144,128]{1,0:T(1,128)}', space=vmem, size = 0x12000, scoped, tag = 'internal scratch']
  %s0 = inlined_call_operand.vmem [shape: f32[3,512], index: 0, kind: input, shape index: {}]
  %s1 = inlined_call_operand.vmem [shape: f32[5,3], index: 1, kind: input, shape index: {}]
  %s2 = inlined_call_operand.vmem [shape: f32[5,1], index: 2, kind: input, shape index: {}]
  %s3 = inlined_call_operand.hbm [shape: f32[5,512], index: 3, kind: output, shape index: {}]
  %s4 = sld [smem:[#allocation0]]
  $region22: #{tpu_custom_call.1} parent=0
    _
  %s6 = ssub.s32 1, %s4
  %s7 = scalar_select 0, %s6, %s4
  $region1: #{tpu_custom_call.1} parent=0
    #allocation2 [shape = 'u8[16384]{0}', space=vmem, size = 0x4000, scoped, tag = 'output window, operand 0, single buffered']
    #allocation3 [shape = 's32[1]{0}', space=sflag, size = 0x4, scoped, tag = 'scoped memory for tpu_custom_call.1']
    %8 = vsyncpa [#allocation3], 0
    // Predicated region
    $region2: #{tpu_custom_call.1} parent=1 // pred_check
      _
    $region3: #{tpu_custom_call.1} parent=1 // pred_check_branch
      %10 = sbr.rel (0) target = $region5
    $region4: #{tpu_custom_call.1} parent=1 // pred_region
      _
    $region5: #{tpu_custom_call.1} parent=1 // pred_fallthru
      _
    // Predicated region
    $region6: #{tpu_custom_call.1} parent=1 // pred_check
      _
    $region7: #{tpu_custom_call.1} parent=1 // pred_check_branch
      %12 = sbr.rel (0) target = $region9
    $region8: #{tpu_custom_call.1} parent=1 // pred_region
      _
    $region9: #{tpu_custom_call.1} parent=1 // pred_fallthru
      _
    // Predicated region
    $region10: #{tpu_custom_call.1} parent=1 // pred_check
      _
    $region11: #{tpu_custom_call.1} parent=1 // pred_check_branch
      %14 = sbr.rel (0) target = $region13
    $region12: #{tpu_custom_call.1} parent=1 // pred_region
      _
    $region13: #{tpu_custom_call.1} parent=1 // pred_fallthru
      _
    %v15 = vld [vmem:[%s1] sm:$0x1f]
    %v16 = vld [vmem:[%s2] sm:$0x1f]
    %v17 = vld [vmem:[%s0] ss:$4 sm:$0xf]
    %19 = vset.pattern.permute.xlu0 0
    %20 = vperm.xlu0 %19, %v15
    %v21 = vpop.permute.xlu0 %20
    %v24 = vlaneseq
    %v25 = vshrl.u32 %v24, 7
    %v26 = vsub.s32 0, %v25
    %v27 = vrot.slane %v17, %v26
    %v28 = vlaneseq
    %v29 = vshrl.u32 %v28, 7
    %v30 = vsub.s32 1, %v29
    %v31 = vrot.slane %v17, %v30
    %v32 = vlaneseq
    %v33 = vshrl.u32 %v32, 7
    %v34 = vsub.s32 2, %v33
    %v35 = vrot.slane %v17, %v34
    %v36 = vlaneseq
    %v37 = vshrl.u32 %v36, 7
    %v38 = vsub.s32 3, %v37
    %v39 = vrot.slane %v17, %v38
    %v44 = vmul.f32 %v21, %v27
    %v45 = vmul.f32 %v21, %v31
    %v46 = vmul.f32 %v21, %v35
    %v47 = vmul.f32 %v21, %v39
    %s48 = scalar_lea.vmem %s0, 1
    %v49 = vld [vmem:[%s48] ss:$4 sm:$0xf]
    %50 = vset.pattern.permute.xlu0 1
    %51 = vperm.xlu0 %50, %v15
    %v52 = vpop.permute.xlu0 %51
    %v55 = vlaneseq
    %v56 = vshrl.u32 %v55, 7
    %v57 = vsub.s32 0, %v56
    %v58 = vrot.slane %v49, %v57
    %v59 = vlaneseq
    %v60 = vshrl.u32 %v59, 7
    %v61 = vsub.s32 1, %v60
    %v62 = vrot.slane %v49, %v61
    %v63 = vlaneseq
    %v64 = vshrl.u32 %v63, 7
    %v65 = vsub.s32 2, %v64
    %v66 = vrot.slane %v49, %v65
    %v67 = vlaneseq
    %v68 = vshrl.u32 %v67, 7
    %v69 = vsub.s32 3, %v68
    %v70 = vrot.slane %v49, %v69
    %v75 = vmul.f32 %v52, %v58
    %v76 = vmul.f32 %v52, %v62
    %v77 = vmul.f32 %v52, %v66
    %v78 = vmul.f32 %v52, %v70
    %v79 = vadd.f32 %v44, %v75
    %v80 = vadd.f32 %v45, %v76
    %v81 = vadd.f32 %v46, %v77
    %v82 = vadd.f32 %v47, %v78
    %s83 = scalar_lea.vmem %s0, 2
    %v84 = vld [vmem:[%s83] ss:$4 sm:$0xf]
    %85 = vset.pattern.permute.xlu0 2
    %86 = vperm.xlu0 %85, %v15
    %v87 = vpop.permute.xlu0 %86
    %v90 = vlaneseq
    %v91 = vshrl.u32 %v90, 7
    %v92 = vsub.s32 0, %v91
    %v93 = vrot.slane %v84, %v92
    %v94 = vlaneseq
    %v95 = vshrl.u32 %v94, 7
    %v96 = vsub.s32 1, %v95
    %v97 = vrot.slane %v84, %v96
    %v98 = vlaneseq
    %v99 = vshrl.u32 %v98, 7
    %v100 = vsub.s32 2, %v99
    %v101 = vrot.slane %v84, %v100
    %v102 = vlaneseq
    %v103 = vshrl.u32 %v102, 7
    %v104 = vsub.s32 3, %v103
    %v105 = vrot.slane %v84, %v104
    %v110 = vmul.f32 %v87, %v93
    %v111 = vmul.f32 %v87, %v97
    %v112 = vmul.f32 %v87, %v101
    %v113 = vmul.f32 %v87, %v105
    %v114 = vadd.f32 %v79, %v110
    %v115 = vadd.f32 %v80, %v111
    %v116 = vadd.f32 %v81, %v112
    %v117 = vadd.f32 %v82, %v113
    %119 = vset.pattern.permute.xlu0 0
    %120 = vperm.xlu0 %119, %v16
    %v121 = vpop.permute.xlu0 %120
    %v123 = vadd.f32 %v114, %v121
    %v124 = vadd.f32 %v115, %v121
    %v125 = vadd.f32 %v116, %v121
    %v126 = vadd.f32 %v117, %v121
    %v127 = vtanh.pop %v123
    %v128 = vtanh.pop %v124
    %v129 = vtanh.pop %v125
    %v130 = vtanh.pop %v126
    %131 = vst [vmem:[#allocation2] sm:$0x1f] %v127
    %132 = vst [vmem:[#allocation2 + $0x8] sm:$0x1f] %v128
    %133 = vst [vmem:[#allocation2 + $0x10] sm:$0x1f] %v129
    %134 = vst [vmem:[#allocation2 + $0x18] sm:$0x1f] %v130
    // Predicated region
    $region14: #{tpu_custom_call.1} parent=1 // pred_check
      _
    $region15: #{tpu_custom_call.1} parent=1 // pred_check_branch
      %136 = sbr.rel (0) target = $region17
    $region16: #{tpu_custom_call.1} parent=1 // pred_region
      %s138 = ssub.s32 512, 512
      %139 = vsyncadd [#allocation3], %s138
      %s141 = sshll.u32 [#allocation2], 4
      %s142 = int_to_ptr.vmem [resolvable:$true] %s141
      %144 = dma.vmem_to_hbm [thread:$0]  %s142, 512, %s3, [#allocation3]
    $region17: #{tpu_custom_call.1} parent=1 // pred_fallthru
      _
    // Predicated region
    $region18: #{tpu_custom_call.1} parent=1 // pred_check
      _
    $region19: #{tpu_custom_call.1} parent=1 // pred_check_branch
      %146 = sbr.rel (0) target = $region21
    $region20: #{tpu_custom_call.1} parent=1 // pred_region
      %147 = dma.done [#allocation3], 512
    $region21: #{tpu_custom_call.1} parent=1 // pred_fallthru
      _
    %148 = vsyncpa [#allocation3], 1

</llo_original>
